<compile_context>
chip_gen: v7x
topology: tpu7x:2x2x1
jax: 0.10.0
libtpu: 0.0.40
codegen_flags: <defaults>
</compile_context>

<pallas_src>
import functools

import jax
import jax.numpy as jnp
from jax.experimental import pallas as pl
from jax.experimental.pallas import tpu as pltpu


def _rmsnorm_kernel(x_ref, scale_ref, o_ref, *, eps, inv_feat):
    # x_ref:     (block_rows, F) tile in VMEM
    # scale_ref: (1, F) broadcast row, resident in VMEM
    # o_ref:     (block_rows, F) output tile
    x = x_ref[...].astype(jnp.float32)
    ms = jnp.sum(x * x, axis=-1, keepdims=True) * inv_feat
    inv = jax.lax.rsqrt(ms + eps)                      # EUP slot -> ~free
    y = x * inv * scale_ref[...].astype(jnp.float32)
    o_ref[...] = y.astype(o_ref.dtype)


def _sublane_multiple(dtype):
    itemsize = jnp.dtype(dtype).itemsize
    return {4: 8, 2: 16, 1: 32}.get(itemsize, 8)


def _physical_vmem_bytes():
    try:
        return int(pltpu.get_tpu_info().vmem_capacity_bytes)
    except Exception:
        # Conservative fallback = v7x per-TensorCore VMEM.
        return 64 * 1024 * 1024


def rmsnorm(x, scale=None, *, eps=1e-5, block_rows=None):
    """RMSNorm over the last axis. Input (..., num_features); matches the
    PyTorch module's forward for (batch, num_features)."""
    orig_shape = x.shape
    F = orig_shape[-1]
    x2 = x.reshape(-1, F)
    B = x2.shape[0]
    dtype = x.dtype
    itemsize = jnp.dtype(dtype).itemsize
    row_align = _sublane_multiple(dtype)

    if scale is None:  # use_scale=False in the PyTorch module
        scale = jnp.ones((F,), dtype=dtype)
    scale2d = scale.reshape(1, F).astype(dtype)

    vmem_bytes = _physical_vmem_bytes()

    if block_rows is None:
        if B <= row_align:
            # Tiny batch: one block equal to the full row extent (always legal).
            block_rows = B
        else:
            # Largest row tile such that the double-buffered input + output
            # tiles (4 live tiles) fit in ~half of physical VMEM.
            budget = vmem_bytes // 2
            bytes_per_row = max(F, 128) * itemsize
            max_rows = max(row_align, budget // (4 * bytes_per_row))
            block_rows = min(int(max_rows), 1024)
            block_rows = max(row_align, (block_rows // row_align) * row_align)
            b_ceil = ((B + row_align - 1) // row_align) * row_align
            block_rows = min(block_rows, b_ceil)
            # Megacore (v7x has 2 TCs): prefer >=2 grid steps when the batch
            # allows it, so "parallel" can shard row blocks across cores.
            if pl.cdiv(B, block_rows) < 2 and b_ceil >= 2 * row_align:
                half = (b_ceil + 1) // 2
                block_rows = max(
                    row_align, ((half + row_align - 1) // row_align) * row_align
                )

    grid = (pl.cdiv(B, block_rows),)

    # Scoped-VMEM limit: 2 double-buffered copies of (in + out) tiles, the
    # scale row, plus headroom — never above physical VMEM.
    tile_bytes = block_rows * max(F, 128) * itemsize
    vmem_limit = min(
        vmem_bytes,
        max(16 * 1024 * 1024, 4 * tile_bytes + max(F, 128) * itemsize + (4 << 20)),
    )

    cost = pl.CostEstimate(
        flops=4 * B * F,
        transcendentals=B,
        bytes_accessed=2 * B * F * itemsize + F * itemsize,
    )

    out = pl.pallas_call(
        functools.partial(_rmsnorm_kernel, eps=eps, inv_feat=1.0 / F),
        out_shape=jax.ShapeDtypeStruct((B, F), dtype),
        grid_spec=pltpu.PrefetchScalarGridSpec(
            num_scalar_prefetch=0,
            grid=grid,
            in_specs=[
                pl.BlockSpec((block_rows, F), lambda i: (i, 0)),
                # Constant index_map: Pallas keeps the resident copy and does
                # not re-DMA the scale row on every grid step.
                pl.BlockSpec((1, F), lambda i: (0, 0)),
            ],
            out_specs=pl.BlockSpec((block_rows, F), lambda i: (i, 0)),
        ),
        compiler_params=pltpu.CompilerParams(
            dimension_semantics=("parallel",),
            vmem_limit_bytes=int(vmem_limit),
        ),
        cost_estimate=cost,
    )(x2, scale2d)

    return out.reshape(orig_shape)


def rmsnorm_ref(x, scale, eps=1e-5):
    ms = jnp.mean(jnp.square(x.astype(jnp.float32)), axis=-1, keepdims=True)
    y = x.astype(jnp.float32) * jax.lax.rsqrt(ms + eps) * scale.astype(jnp.float32)
    return y.astype(x.dtype)


if __name__ == "__main__":
    key = jax.random.PRNGKey(0)

    # Small shapes matching the module's (batch, num_features) forward.
    batch, num_features = 8, 32
    x = jax.random.normal(key, (batch, num_features), dtype=jnp.float32)
    # nn.Parameter(torch.ones(num_features))
    scale = jnp.ones((num_features,), dtype=jnp.float32)

    out = jax.block_until_ready(rmsnorm(x, scale, eps=1e-5))
    ref = rmsnorm_ref(x, scale, eps=1e-5)
    assert out.shape == (batch, num_features)
    assert jnp.allclose(out, ref, atol=1e-5, rtol=1e-5), "mismatch vs reference"

    # Awkward batch (not a multiple of the row tile) exercises the cdiv path.
    x2 = jax.random.normal(jax.random.PRNGKey(1), (12, num_features), jnp.float32)
    out2 = jax.block_until_ready(rmsnorm(x2, scale, eps=1e-5))
    ref2 = rmsnorm_ref(x2, scale, eps=1e-5)
    assert out2.shape == (12, num_features)
    assert jnp.allclose(out2, ref2, atol=1e-5, rtol=1e-5), "mismatch (ragged B)"

    # Lane-dense feature width (multiple of 128), non-unit scale values.
    F3 = 256
    x3 = jax.random.normal(jax.random.PRNGKey(2), (16, F3), jnp.float32)
    s3 = 1.0 + 0.1 * jax.random.normal(jax.random.PRNGKey(3), (F3,), jnp.float32)
    out3 = jax.block_until_ready(rmsnorm(x3, s3, eps=1e-5))
    ref3 = rmsnorm_ref(x3, s3, eps=1e-5)
    assert jnp.allclose(out3, ref3, atol=1e-5, rtol=1e-5), "mismatch (F=256)"

    # use_scale=False path.
    out4 = jax.block_until_ready(rmsnorm(x, None, eps=1e-5))
    ref4 = rmsnorm_ref(x, jnp.ones((num_features,), jnp.float32), eps=1e-5)
    assert jnp.allclose(out4, ref4, atol=1e-5, rtol=1e-5), "mismatch (no scale)"

    print("KERNEL_OK")
</pallas_src>

<mosaic_0001>
module attributes {stable_mosaic.version = 11 : i64} {
  func.func @_rmsnorm_kernel(%arg0: i32, %arg1: memref<8x32xf32, #tpu.memory_space<vmem>>, %arg2: memref<1x32xf32, #tpu.memory_space<vmem>>, %arg3: memref<8x32xf32, #tpu.memory_space<vmem>>) attributes {dimension_semantics = [#tpu.dimension_semantics<parallel>], iteration_bounds = array<i64: 1>, scalar_prefetch = 0 : i64, scratch_operands = 0 : i64, tpu.core_type = #tpu.core_type<tc>, window_params = [{transform_indices = @transform_0, window_bounds = array<i64: 8, 32>}, {pipeline_mode = #tpu.pipeline_mode<synchronous>, transform_indices = @transform_1, window_bounds = array<i64: 1, 32>}, {transform_indices = @transform_2, window_bounds = array<i64: 8, 32>}]} {
    %c0 = arith.constant 0 : index
    %c0_0 = arith.constant 0 : index
    %0 = vector.load %arg1[%c0, %c0_0] : memref<8x32xf32, #tpu.memory_space<vmem>>, vector<8x32xf32>
    %1 = arith.mulf %0, %0 : vector<8x32xf32>
    %cst = arith.constant dense<0.000000e+00> : vector<8xf32>
    %2 = vector.multi_reduction <add>, %1, %cst [1] : vector<8x32xf32> to vector<8xf32>
    %3 = vector.shape_cast %2 : vector<8xf32> to vector<8x1xf32>
    %cst_1 = arith.constant 3.125000e-02 : f32
    %4 = vector.broadcast %cst_1 : f32 to vector<8x1xf32>
    %5 = arith.mulf %3, %4 : vector<8x1xf32>
    %cst_2 = arith.constant 9.99999974E-6 : f32
    %6 = vector.broadcast %cst_2 : f32 to vector<8x1xf32>
    %7 = arith.addf %5, %6 : vector<8x1xf32>
    %8 = math.rsqrt %7 : vector<8x1xf32>
    %9 = vector.broadcast %8 : vector<8x1xf32> to vector<8x32xf32>
    %10 = arith.mulf %0, %9 : vector<8x32xf32>
    %c0_3 = arith.constant 0 : index
    %c0_4 = arith.constant 0 : index
    %11 = vector.load %arg2[%c0_3, %c0_4] : memref<1x32xf32, #tpu.memory_space<vmem>>, vector<1x32xf32>
    %12 = vector.broadcast %11 : vector<1x32xf32> to vector<8x32xf32>
    %13 = arith.mulf %10, %12 : vector<8x32xf32>
    %c0_5 = arith.constant 0 : index
    %c0_6 = arith.constant 0 : index
    %14 = vector.load %arg3[%c0_5, %c0_6] : memref<8x32xf32, #tpu.memory_space<vmem>>, vector<8x32xf32>
    tpu.vector_store %arg3[%c0_5, %c0_6], %13 {strides = array<i32>} : memref<8x32xf32, #tpu.memory_space<vmem>>, vector<8x32xf32>,
    return
  }
  func.func @transform_0(%arg0: i32) -> (i32, i32) {
    %c0_i32 = arith.constant 0 : i32
    %c0_i32_0 = arith.constant 0 : i32
    return %arg0, %c0_i32 : i32, i32
  }
  func.func @transform_1(%arg0: i32) -> (i32, i32) {
    %c0_i32 = arith.constant 0 : i32
    %c0_i32_0 = arith.constant 0 : i32
    %c0_i32_1 = arith.constant 0 : i32
    return %c0_i32, %c0_i32_0 : i32, i32
  }
  func.func @transform_2(%arg0: i32) -> (i32, i32) {
    %c0_i32 = arith.constant 0 : i32
    %c0_i32_0 = arith.constant 0 : i32
    return %arg0, %c0_i32 : i32, i32
  }
}

</mosaic_0001>

<llo_original>
// kernel: tpu_custom_call.1
$region0: #{tpu_custom_call.1}
  #allocation0 [shape = 'u32[]', space=smem, size = 0x4, offset = 0x4, fixed_abs, tag = 'smem constant byte address 0x4 - core index']
  #allocation1 [shape = 'u32[144,128]{1,0:T(1,128)}', space=vmem, size = 0x12000, scoped, tag = 'internal scratch']
  %s0 = inlined_call_operand.hbm [shape: f32[8,32], index: 0, kind: input, shape index: {}]
  %s1 = inlined_call_operand.vmem [shape: f32[1,32], index: 1, kind: input, shape index: {}]
  %s2 = inlined_call_operand.hbm [shape: f32[8,32], index: 2, kind: output, shape index: {}]
  %s3 = sld [smem:[#allocation0]]
  $region22: #{tpu_custom_call.1} parent=0
    _
  %s5 = ssub.s32 1, %s3
  %s6 = scalar_select 0, %s5, %s3
  $region1: #{tpu_custom_call.1} parent=0
    #allocation2 [shape = 'u8[4096]{0}', space=vmem, size = 0x1000, scoped, tag = 'input window, operand 0, single buffered']
    #allocation3 [shape = 's32[1]{0}', space=sflag, size = 0x4, scoped, tag = 'scoped memory for tpu_custom_call.1']
    #allocation4 [shape = 's32[1]{0}', space=sflag, size = 0x4, scoped, tag = 'scoped memory for tpu_custom_call.1']
    #allocation5 [shape = 'u8[4096]{0}', space=vmem, size = 0x1000, scoped, tag = 'output window, operand 0, single buffered']
    %7 = vsyncpa [#allocation3], 0
    %8 = vsyncpa [#allocation4], 0
    // Predicated region
    $region2: #{tpu_custom_call.1} parent=1 // pred_check
      _
    $region3: #{tpu_custom_call.1} parent=1 // pred_check_branch
      %10 = sbr.rel (0) target = $region5
    $region4: #{tpu_custom_call.1} parent=1 // pred_region
      %s12 = ssub.s32 128, 128
      %13 = vsyncadd [#allocation3], %s12
      %s15 = sshll.u32 [#allocation2], 4
      %s16 = int_to_ptr.vmem [resolvable:$true] %s15
      %18 = dma.hbm_to_vmem [thread:$0]  %s0, 128, %s16, [#allocation3]
    $region5: #{tpu_custom_call.1} parent=1 // pred_fallthru
      _
    // Predicated region
    $region6: #{tpu_custom_call.1} parent=1 // pred_check
      _
    $region7: #{tpu_custom_call.1} parent=1 // pred_check_branch
      %20 = sbr.rel (0) target = $region9
    $region8: #{tpu_custom_call.1} parent=1 // pred_region
      _
    $region9: #{tpu_custom_call.1} parent=1 // pred_fallthru
      _
    // Predicated region
    $region10: #{tpu_custom_call.1} parent=1 // pred_check
      _
    $region11: #{tpu_custom_call.1} parent=1 // pred_check_branch
      %22 = sbr.rel (0) target = $region13
    $region12: #{tpu_custom_call.1} parent=1 // pred_region
      %23 = dma.done [#allocation3], 128
    $region13: #{tpu_custom_call.1} parent=1 // pred_fallthru
      _
    %v24 = vld [vmem:[#allocation2] sm:$0xff]
    %v25 = vmul.f32 %v24, %v24
    %vm26 = vcmask 261120
    %v27 = vsel %vm26, %v25, 0.0
    %28 = vadd.xlane.f32.xlu0 %v27
    %v29 = vpop.xlane.xlu0 %28
    %v30 = vmul.f32 %v29, 0.03125
    %v31 = vadd.f32 %v30, 1e-05
    %v32 = vrsqrt.pop %v31
    %v33 = vmul.f32 %v24, %v32
    %v34 = vld [vmem:[%s1] sm:$0x1]
    %v36 = vlaneseq
    %v37 = vshrl.u32 %v36, 7
    %v38 = vsub.s32 0, %v37
    %v39 = vrot.slane %v34, %v38
    %v41 = vmul.f32 %v33, %v39
    %42 = vst.msk [vmem:[#allocation5] sm:$0xff] %vm26, %v41
    // Predicated region
    $region14: #{tpu_custom_call.1} parent=1 // pred_check
      _
    $region15: #{tpu_custom_call.1} parent=1 // pred_check_branch
      %44 = sbr.rel (0) target = $region17
    $region16: #{tpu_custom_call.1} parent=1 // pred_region
      %s46 = ssub.s32 128, 128
      %47 = vsyncadd [#allocation4], %s46
      %s49 = sshll.u32 [#allocation5], 4
      %s50 = int_to_ptr.vmem [resolvable:$true] %s49
      %52 = dma.vmem_to_hbm [thread:$0]  %s50, 128, %s2, [#allocation4]
    $region17: #{tpu_custom_call.1} parent=1 // pred_fallthru
      _
    // Predicated region
    $region18: #{tpu_custom_call.1} parent=1 // pred_check
      _
    $region19: #{tpu_custom_call.1} parent=1 // pred_check_branch
      %54 = sbr.rel (0) target = $region21
    $region20: #{tpu_custom_call.1} parent=1 // pred_region
      %55 = dma.done [#allocation4], 128
    $region21: #{tpu_custom_call.1} parent=1 // pred_fallthru
      _
    %56 = vsyncpa [#allocation3], 1
    %57 = vsyncpa [#allocation4], 1

</llo_original>
